<compile_context>
chip_gen: v5e
topology: v5e:2x2
jax: 0.10.0
libtpu: 0.0.40
codegen_flags: <defaults>
</compile_context>

<pallas_src>
import functools
import math

import jax
import jax.numpy as jnp
from jax import lax
from jax.experimental import pallas as pl
from jax.experimental.pallas import tpu as pltpu


def create_positional_encoding(max_len, d_model):
    """Exact replica of Embeddings.create_positinal_encoding (note the quirky
    exponent: cos uses 2*(i+1)/d_model with i the even column index)."""
    pos = jnp.arange(max_len, dtype=jnp.float32)[:, None]           # (max_len, 1)
    i_even = jnp.arange(0, d_model, 2, dtype=jnp.float32)[None, :]  # (1, d_model/2)
    sin_part = jnp.sin(pos / 10000.0 ** (2.0 * i_even / d_model))
    cos_part = jnp.cos(pos / 10000.0 ** (2.0 * (i_even + 1.0) / d_model))
    pe = jnp.zeros((max_len, d_model), dtype=jnp.float32)
    pe = pe.at[:, 0::2].set(sin_part)
    pe = pe.at[:, 1::2].set(cos_part)
    return pe  # (max_len, d_model)


# ----------------------------------------------------------------------------
# Fast path: embedding table resident in VMEM (small tables).
# ----------------------------------------------------------------------------
def _embeddings_kernel_vmem(ids_ref,     # SMEM: (B*S,) int32       (scalar prefetch)
                            pe_ref,      # VMEM: (tile_s, D) f32    positional-enc tile
                            table_ref,   # VMEM: (V, D)             whole table (native dtype)
                            out_ref,     # VMEM: (tile_s, D) f32    output tile (batch squeezed)
                            rows_ref,    # VMEM scratch: (tile_s, D) native dtype
                            *, seq_len, tile_s, scale, seq_outer, unroll):
    if seq_outer:
        s_idx, b = pl.program_id(0), pl.program_id(1)
    else:
        b, s_idx = pl.program_id(0), pl.program_id(1)
    base = b * seq_len + s_idx * tile_s

    # Gather: plain dynamic-slice loads from the VMEM-resident table (no DMAs).
    def gather_row(j, carry):
        tok = ids_ref[base + j]
        rows_ref[pl.ds(j, 1), :] = table_ref[pl.ds(tok, 1), :]
        return carry

    lax.fori_loop(0, tile_s, gather_row, 0, unroll=unroll)

    # Fused upcast + sqrt(d_model) scale + positional-encoding add (one VPU pass).
    out_ref[...] = rows_ref[...].astype(jnp.float32) * scale + pe_ref[...]
    # TODO(synk): nn.Dropout(0.1) is identity in eval mode; a training-mode forward
    # would need pltpu.prng_seed + pltpu.prng_random_bits masking here.


# ----------------------------------------------------------------------------
# Large-table path: table stays in HBM; chunked, overlapped row-gather DMAs.
# ----------------------------------------------------------------------------
def _embeddings_kernel_hbm(ids_ref,      # SMEM: (B*S,) int32       (scalar prefetch)
                           pe_ref,       # VMEM: (tile_s, D) f32
                           table_hbm,    # HBM : (V, D)             raw ref (pl.ANY)
                           out_ref,      # VMEM: (tile_s, D) f32
                           rows_ref,     # VMEM scratch: (tile_s, D) native dtype
                           sems,         # DMA semaphores: (2, chunk) ring
                           *, seq_len, tile_s, chunk, scale, seq_outer):
    if seq_outer:
        s_idx, b = pl.program_id(0), pl.program_id(1)
    else:
        b, s_idx = pl.program_id(0), pl.program_id(1)
    base = b * seq_len + s_idx * tile_s
    n_chunks = tile_s // chunk

    def issue(c):
        # Issue `chunk` row DMAs for chunk c; the semaphore bank alternates with
        # chunk parity so chunk c+1 can be in flight while chunk c is waited on.
        bank = c % 2
        for k in range(chunk):
            j = c * chunk + k
            tok = ids_ref[base + j]
            pltpu.make_async_copy(table_hbm.at[pl.ds(tok, 1), :],
                                  rows_ref.at[pl.ds(j, 1), :],
                                  sems.at[bank, k]).start()

    def wait(c):
        bank = c % 2
        for k in range(chunk):
            # Dummy src/dst of identical (1, D) size — only the semaphore + byte
            # count matter for the wait.
            pltpu.make_async_copy(table_hbm.at[pl.ds(0, 1), :],
                                  rows_ref.at[pl.ds(0, 1), :],
                                  sems.at[bank, k]).wait()

    # Software-pipelined gather: issue chunk c+1 before waiting on chunk c.
    issue(0)

    def body(c, carry):
        @pl.when(c + 1 < n_chunks)
        def _():
            issue(c + 1)
        wait(c)
        return carry

    lax.fori_loop(0, n_chunks, body, 0)

    # Fused upcast + scale + positional-encoding add.
    out_ref[...] = rows_ref[...].astype(jnp.float32) * scale + pe_ref[...]
    # TODO(synk): eval-mode dropout only (identity); see note in the fast-path kernel.


# ----------------------------------------------------------------------------
# Wrapper
# ----------------------------------------------------------------------------
_VMEM_SOFT_CAP = 48 * 1024 * 1024         # stay well under v7x's 64 MiB physical VMEM
_FAST_PATH_TABLE_BYTES = 8 * 1024 * 1024  # tables up to 8 MiB go fully VMEM-resident


def _choose_tile_s(S, cap=256):
    if S <= cap:
        return S                           # full extent is always a legal block dim
    for t in range(cap, 7, -1):            # largest divisor of S that is a multiple of 8
        if S % t == 0 and t % 8 == 0:
            return t
    return S                               # no nice divisor: whole sequence per tile


def embeddings_forward(encoded_words, embed_table, pe, *,
                       tile_s=None, dma_chunk=8, force_hbm_table=False):
    """Pallas TPU forward of `Embeddings`: embed(x) * sqrt(D) + pe[:, :S] (eval dropout).

    encoded_words: (B, S) int; embed_table: (V, D) float (any dtype); pe: (max_len, D).
    """
    B, S = encoded_words.shape
    V, D = embed_table.shape
    if tile_s is None:
        tile_s = _choose_tile_s(S)
    assert S % tile_s == 0, "S must be divisible by tile_s"
    n_s = S // tile_s

    # Token ids ride the scalar path (SMEM). Clamp once here: nn.Embedding would
    # raise on out-of-range ids; we map them to valid rows instead of faulting.
    if B * S > (1 << 16):
        raise ValueError("flat token-id vector too large for SMEM scalar prefetch")
    ids = jnp.clip(encoded_words.reshape(B * S).astype(jnp.int32), 0, V - 1)

    pe_s = pe[:S].astype(jnp.float32)      # (S, D), block-indexed by the seq tile only
    table = embed_table                    # native dtype; upcast happens in-kernel

    itemsize = table.dtype.itemsize
    table_bytes = V * D * itemsize
    tile_f32_bytes = tile_s * D * 4
    # pipeline buffers: pe x2 + out x2 (double buffered) + rows scratch
    pipe_bytes = 4 * tile_f32_bytes + tile_s * D * itemsize

    use_vmem_table = (not force_hbm_table) and (table_bytes <= _FAST_PATH_TABLE_BYTES)
    # The full-extent table BlockSpec may be double-buffered by the pipeline, so
    # budget it twice on the fast path.
    est_bytes = pipe_bytes + (2 * table_bytes if use_vmem_table else 0)
    vmem_limit = None
    if est_bytes > 12 * 1024 * 1024:       # beyond v5e's 16 MiB scoped-default comfort zone
        vmem_limit = min(int(est_bytes * 1.25) + (2 << 20), _VMEM_SOFT_CAP)

    # Grid order: seq tile outer / batch inner so the PE block index is constant
    # along the inner axis (fetched once per seq tile, not B times). With a single
    # seq tile, lead with batch so the leading "parallel" axis has >= 2 work units.
    seq_outer = n_s > 1
    if seq_outer:
        grid = (n_s, B)
        b_of = lambda g0, g1: g1
        s_of = lambda g0, g1: g0
    else:
        grid = (B, n_s)
        b_of = lambda g0, g1: g0
        s_of = lambda g0, g1: g1

    pe_spec = pl.BlockSpec((tile_s, D), lambda g0, g1, _ids: (s_of(g0, g1), 0))
    out_spec = pl.BlockSpec((None, tile_s, D),
                            lambda g0, g1, _ids: (b_of(g0, g1), s_of(g0, g1), 0))

    if use_vmem_table:
        # Whole table resident in VMEM (constant block index -> fetched once).
        table_spec = pl.BlockSpec((V, D), lambda g0, g1, _ids: (0, 0))
        unroll = 8 if tile_s % 8 == 0 else 1
        kernel = functools.partial(
            _embeddings_kernel_vmem, seq_len=S, tile_s=tile_s,
            scale=float(math.sqrt(D)), seq_outer=seq_outer, unroll=unroll)
        scratch = [pltpu.VMEM((tile_s, D), table.dtype)]
    else:
        # Table stays in HBM; chunked async-copy gather with a small semaphore ring.
        chunk = max(1, math.gcd(tile_s, dma_chunk))
        table_spec = pl.BlockSpec(memory_space=pl.ANY)
        kernel = functools.partial(
            _embeddings_kernel_hbm, seq_len=S, tile_s=tile_s, chunk=chunk,
            scale=float(math.sqrt(D)), seq_outer=seq_outer)
        scratch = [pltpu.VMEM((tile_s, D), table.dtype),
                   pltpu.SemaphoreType.DMA((2, chunk))]

    out = pl.pallas_call(
        kernel,
        out_shape=jax.ShapeDtypeStruct((B, S, D), jnp.float32),
        grid_spec=pltpu.PrefetchScalarGridSpec(
            num_scalar_prefetch=1,          # ids -> SMEM, drive the gather
            grid=grid,
            in_specs=[pe_spec, table_spec],
            out_specs=out_spec,
            scratch_shapes=scratch,
        ),
        compiler_params=pltpu.CompilerParams(
            dimension_semantics=("parallel", "parallel"),
            vmem_limit_bytes=vmem_limit),
    )(ids, pe_s, table)
    return out


if __name__ == "__main__":
    vocab_size = 50
    d_model = 32
    max_len = 250
    B, S = 2, 8

    key = jax.random.PRNGKey(0)
    k_emb, k_tok = jax.random.split(key)

    # Deterministic synthetic parameters (nn.Embedding weight ~ N(0, 1)).
    embed_table = jax.random.normal(k_emb, (vocab_size, d_model), dtype=jnp.float32)
    pe = create_positional_encoding(max_len, d_model)
    encoded_words = jax.random.randint(k_tok, (B, S), 0, vocab_size, dtype=jnp.int32)

    # Pure-JAX reference (eval-mode dropout == identity).
    ref = embed_table[encoded_words] * math.sqrt(d_model) + pe[None, :S, :]

    # 1) Fast path: table resident in VMEM (the common case for small vocab/dim).
    out_fast = jax.block_until_ready(embeddings_forward(encoded_words, embed_table, pe))
    assert out_fast.shape == (B, S, d_model)
    assert jnp.allclose(out_fast, ref, atol=1e-5, rtol=1e-5), "fast-path mismatch"

    # 2) HBM path: forced for coverage of the chunked/overlapped DMA gather
    #    (dma_chunk=4 -> two chunks, so the issue-ahead branch is exercised).
    out_hbm = jax.block_until_ready(
        embeddings_forward(encoded_words, embed_table, pe,
                           force_hbm_table=True, dma_chunk=4))
    assert jnp.allclose(out_hbm, ref, atol=1e-5, rtol=1e-5), "hbm-path mismatch"

    print("KERNEL_OK")
</pallas_src>

<mosaic_0001>
module attributes {stable_mosaic.version = 11 : i64} {
  func.func @_embeddings_kernel_vmem(%arg0: i32, %arg1: i32, %arg2: memref<16xi32, #tpu.memory_space<smem>>, %arg3: memref<8x32xf32, #tpu.memory_space<vmem>>, %arg4: memref<50x32xf32, #tpu.memory_space<vmem>>, %arg5: memref<1x8x32xf32, #tpu.memory_space<vmem>>, %arg6: memref<8x32xf32, #tpu.memory_space<vmem>>) attributes {dimension_semantics = [#tpu.dimension_semantics<parallel>, #tpu.dimension_semantics<parallel>], iteration_bounds = array<i64: 2, 1>, scalar_prefetch = 1 : i64, scratch_operands = 1 : i64, tpu.core_type = #tpu.core_type<tc>, window_params = [{transform_indices = @transform_0, window_bounds = array<i64: 8, 32>}, {pipeline_mode = #tpu.pipeline_mode<synchronous>, transform_indices = @transform_1, window_bounds = array<i64: 50, 32>}, {transform_indices = @transform_2, window_bounds = array<i64: 1, 8, 32>}]} {
    %c8_i32 = arith.constant 8 : i32
    %0 = arith.muli %arg0, %c8_i32 : i32
    %c8_i32_0 = arith.constant 8 : i32
    %1 = arith.muli %arg1, %c8_i32_0 : i32
    %2 = arith.addi %0, %1 : i32
    %c0_i32 = arith.constant 0 : i32
    %3 = arith.addi %2, %c0_i32 : i32
    %4 = arith.index_cast %3 : i32 to index
    %5 = memref.load %arg2[%4] : memref<16xi32, #tpu.memory_space<smem>>
    %6 = arith.index_cast %5 : i32 to index
    %c0 = arith.constant 0 : index
    %7 = vector.load %arg4[%6, %c0] : memref<50x32xf32, #tpu.memory_space<vmem>>, vector<1x32xf32>
    %8 = arith.index_cast %c0_i32 : i32 to index
    %c0_1 = arith.constant 0 : index
    %9 = vector.load %arg6[%8, %c0_1] : memref<8x32xf32, #tpu.memory_space<vmem>>, vector<1x32xf32>
    tpu.vector_store %arg6[%8, %c0_1], %7 {strides = array<i32>} : memref<8x32xf32, #tpu.memory_space<vmem>>, vector<1x32xf32>,
    %c1_i32 = arith.constant 1 : i32
    %10 = arith.addi %2, %c1_i32 : i32
    %11 = arith.index_cast %10 : i32 to index
    %12 = memref.load %arg2[%11] : memref<16xi32, #tpu.memory_space<smem>>
    %13 = arith.index_cast %12 : i32 to index
    %c0_2 = arith.constant 0 : index
    %14 = vector.load %arg4[%13, %c0_2] : memref<50x32xf32, #tpu.memory_space<vmem>>, vector<1x32xf32>
    %15 = arith.index_cast %c1_i32 : i32 to index
    %c0_3 = arith.constant 0 : index
    %16 = vector.load %arg6[%15, %c0_3] : memref<8x32xf32, #tpu.memory_space<vmem>>, vector<1x32xf32>
    tpu.vector_store %arg6[%15, %c0_3], %14 {strides = array<i32>} : memref<8x32xf32, #tpu.memory_space<vmem>>, vector<1x32xf32>,
    %c2_i32 = arith.constant 2 : i32
    %17 = arith.addi %2, %c2_i32 : i32
    %18 = arith.index_cast %17 : i32 to index
    %19 = memref.load %arg2[%18] : memref<16xi32, #tpu.memory_space<smem>>
    %20 = arith.index_cast %19 : i32 to index
    %c0_4 = arith.constant 0 : index
    %21 = vector.load %arg4[%20, %c0_4] : memref<50x32xf32, #tpu.memory_space<vmem>>, vector<1x32xf32>
    %22 = arith.index_cast %c2_i32 : i32 to index
    %c0_5 = arith.constant 0 : index
    %23 = vector.load %arg6[%22, %c0_5] : memref<8x32xf32, #tpu.memory_space<vmem>>, vector<1x32xf32>
    tpu.vector_store %arg6[%22, %c0_5], %21 {strides = array<i32>} : memref<8x32xf32, #tpu.memory_space<vmem>>, vector<1x32xf32>,
    %c3_i32 = arith.constant 3 : i32
    %24 = arith.addi %2, %c3_i32 : i32
    %25 = arith.index_cast %24 : i32 to index
    %26 = memref.load %arg2[%25] : memref<16xi32, #tpu.memory_space<smem>>
    %27 = arith.index_cast %26 : i32 to index
    %c0_6 = arith.constant 0 : index
    %28 = vector.load %arg4[%27, %c0_6] : memref<50x32xf32, #tpu.memory_space<vmem>>, vector<1x32xf32>
    %29 = arith.index_cast %c3_i32 : i32 to index
    %c0_7 = arith.constant 0 : index
    %30 = vector.load %arg6[%29, %c0_7] : memref<8x32xf32, #tpu.memory_space<vmem>>, vector<1x32xf32>
    tpu.vector_store %arg6[%29, %c0_7], %28 {strides = array<i32>} : memref<8x32xf32, #tpu.memory_space<vmem>>, vector<1x32xf32>,
    %c4_i32 = arith.constant 4 : i32
    %31 = arith.addi %2, %c4_i32 : i32
    %32 = arith.index_cast %31 : i32 to index
    %33 = memref.load %arg2[%32] : memref<16xi32, #tpu.memory_space<smem>>
    %34 = arith.index_cast %33 : i32 to index
    %c0_8 = arith.constant 0 : index
    %35 = vector.load %arg4[%34, %c0_8] : memref<50x32xf32, #tpu.memory_space<vmem>>, vector<1x32xf32>
    %36 = arith.index_cast %c4_i32 : i32 to index
    %c0_9 = arith.constant 0 : index
    %37 = vector.load %arg6[%36, %c0_9] : memref<8x32xf32, #tpu.memory_space<vmem>>, vector<1x32xf32>
    tpu.vector_store %arg6[%36, %c0_9], %35 {strides = array<i32>} : memref<8x32xf32, #tpu.memory_space<vmem>>, vector<1x32xf32>,
    %c5_i32 = arith.constant 5 : i32
    %38 = arith.addi %2, %c5_i32 : i32
    %39 = arith.index_cast %38 : i32 to index
    %40 = memref.load %arg2[%39] : memref<16xi32, #tpu.memory_space<smem>>
    %41 = arith.index_cast %40 : i32 to index
    %c0_10 = arith.constant 0 : index
    %42 = vector.load %arg4[%41, %c0_10] : memref<50x32xf32, #tpu.memory_space<vmem>>, vector<1x32xf32>
    %43 = arith.index_cast %c5_i32 : i32 to index
    %c0_11 = arith.constant 0 : index
    %44 = vector.load %arg6[%43, %c0_11] : memref<8x32xf32, #tpu.memory_space<vmem>>, vector<1x32xf32>
    tpu.vector_store %arg6[%43, %c0_11], %42 {strides = array<i32>} : memref<8x32xf32, #tpu.memory_space<vmem>>, vector<1x32xf32>,
    %c6_i32 = arith.constant 6 : i32
    %45 = arith.addi %2, %c6_i32 : i32
    %46 = arith.index_cast %45 : i32 to index
    %47 = memref.load %arg2[%46] : memref<16xi32, #tpu.memory_space<smem>>
    %48 = arith.index_cast %47 : i32 to index
    %c0_12 = arith.constant 0 : index
    %49 = vector.load %arg4[%48, %c0_12] : memref<50x32xf32, #tpu.memory_space<vmem>>, vector<1x32xf32>
    %50 = arith.index_cast %c6_i32 : i32 to index
    %c0_13 = arith.constant 0 : index
    %51 = vector.load %arg6[%50, %c0_13] : memref<8x32xf32, #tpu.memory_space<vmem>>, vector<1x32xf32>
    tpu.vector_store %arg6[%50, %c0_13], %49 {strides = array<i32>} : memref<8x32xf32, #tpu.memory_space<vmem>>, vector<1x32xf32>,
    %c7_i32 = arith.constant 7 : i32
    %52 = arith.addi %2, %c7_i32 : i32
    %53 = arith.index_cast %52 : i32 to index
    %54 = memref.load %arg2[%53] : memref<16xi32, #tpu.memory_space<smem>>
    %55 = arith.index_cast %54 : i32 to index
    %c0_14 = arith.constant 0 : index
    %56 = vector.load %arg4[%55, %c0_14] : memref<50x32xf32, #tpu.memory_space<vmem>>, vector<1x32xf32>
    %57 = arith.index_cast %c7_i32 : i32 to index
    %c0_15 = arith.constant 0 : index
    %58 = vector.load %arg6[%57, %c0_15] : memref<8x32xf32, #tpu.memory_space<vmem>>, vector<1x32xf32>
    tpu.vector_store %arg6[%57, %c0_15], %56 {strides = array<i32>} : memref<8x32xf32, #tpu.memory_space<vmem>>, vector<1x32xf32>,
    %c8_i32_16 = arith.constant 8 : i32
    %c0_17 = arith.constant 0 : index
    %c0_18 = arith.constant 0 : index
    %59 = vector.load %arg6[%c0_17, %c0_18] : memref<8x32xf32, #tpu.memory_space<vmem>>, vector<8x32xf32>
    %cst = arith.constant 5.65685415 : f32
    %60 = vector.broadcast %cst : f32 to vector<8x32xf32>
    %61 = arith.mulf %59, %60 : vector<8x32xf32>
    %c0_19 = arith.constant 0 : index
    %c0_20 = arith.constant 0 : index
    %62 = vector.load %arg3[%c0_19, %c0_20] : memref<8x32xf32, #tpu.memory_space<vmem>>, vector<8x32xf32>
    %63 = arith.addf %61, %62 : vector<8x32xf32>
    %c0_21 = arith.constant 0 : index
    %c0_22 = arith.constant 0 : index
    %c0_23 = arith.constant 0 : index
    %64 = vector.load %arg5[%c0_21, %c0_22, %c0_23] : memref<1x8x32xf32, #tpu.memory_space<vmem>>, vector<1x8x32xf32>
    %65 = vector.shape_cast %64 : vector<1x8x32xf32> to vector<8x32xf32>
    %66 = vector.shape_cast %63 : vector<8x32xf32> to vector<1x8x32xf32>
    tpu.vector_store %arg5[%c0_21, %c0_22, %c0_23], %66 {strides = array<i32>} : memref<1x8x32xf32, #tpu.memory_space<vmem>>, vector<1x8x32xf32>,
    return
  }
  func.func @transform_0(%arg0: i32, %arg1: i32, %arg2: memref<16xi32, #tpu.memory_space<smem>>) -> (i32, i32) {
    %c0_i32 = arith.constant 0 : i32
    %c0_i32_0 = arith.constant 0 : i32
    return %arg1, %c0_i32 : i32, i32
  }
  func.func @transform_1(%arg0: i32, %arg1: i32, %arg2: memref<16xi32, #tpu.memory_space<smem>>) -> (i32, i32) {
    %c0_i32 = arith.constant 0 : i32
    %c0_i32_0 = arith.constant 0 : i32
    %c0_i32_1 = arith.constant 0 : i32
    return %c0_i32, %c0_i32_0 : i32, i32
  }
  func.func @transform_2(%arg0: i32, %arg1: i32, %arg2: memref<16xi32, #tpu.memory_space<smem>>) -> (i32, i32, i32) {
    %c0_i32 = arith.constant 0 : i32
    %c0_i32_0 = arith.constant 0 : i32
    return %arg0, %arg1, %c0_i32 : i32, i32, i32
  }
}

</mosaic_0001>

<llo_original>
// kernel: tpu_custom_call.1
$region0: #{tpu_custom_call.1}
  #allocation0 [shape = 'u32[]', space=smem, size = 0x4, offset = 0x4, fixed_abs, tag = 'smem constant byte address 0x4 - core index']
  #allocation1 [shape = 'u32[72,128]{1,0:T(1,128)}', space=vmem, size = 0x9000, scoped, tag = 'internal scratch']
  #allocation2 [shape = 'f32[8,32]{1,0:T(8,128)}', space=vmem, size = 0x1000, scoped, tag = 'scratch operand']
  #allocation3 [shape = 's32[1]{0}', space=sflag, size = 0x4, scoped, tag = 'scoped memory for tpu_custom_call.1']
  #allocation4 [shape = 'u8[512]{0}', space=smem, size = 0x200, scoped, tag = 'prefetched SMEM operand 0']
  %s0 = inlined_call_operand.vmem [shape: s32[16], index: 0, kind: input, shape index: {}]
  %s1 = inlined_call_operand.vmem [shape: f32[8,32], index: 1, kind: input, shape index: {}]
  %s2 = inlined_call_operand.vmem [shape: f32[50,32], index: 2, kind: input, shape index: {}]
  %s3 = inlined_call_operand.hbm [shape: f32[2,8,32], index: 3, kind: output, shape index: {}]
  %s4 = sld [smem:[#allocation0]]
  $region41: #{tpu_custom_call.1} parent=0
    _
  %s6 = ssub.s32 1, %s4
  %s7 = scalar_select 0, %s6, %s4
  %s9 = sshll.u32 %s0, 4
  %s10 = int_to_ptr.vmem [resolvable:$true] %s9
  %12 = dma.vmem_to_smem %s10, 16, [#allocation4], [#allocation3]
  %14 = dma.done [#allocation3], 16
  %15 = sfence
  $region1: #{tpu_custom_call.1} parent=0
    #allocation5 [shape = 'u8[8192]{0}', space=vmem, size = 0x2000, scoped, tag = 'output window, operand 0']
    #allocation6 [shape = 's32[2]{0}', space=sflag, size = 0x8, scoped, tag = 'scoped memory for tpu_custom_call.1']
    %16 = vsyncpa [#allocation6], 0
    %s17 = scalar_lea.sflag [#allocation6], 1
    %18 = vsyncpa %s17, 0
    loop: start=0, step=1, limit=4
    $region2: #{tpu_custom_call.1} parent=1 // loop_pre_header
      _
    $region3: #{tpu_custom_call.1} parent=1 // loop_header
      %s20 = sphi 0, %s24
      %p21 = scmp.ge.s32.totalorder %s20, 4
      %s27 = sphi 0, %s39
      %s28 = sphi 0, %s35
      %s29 = sphi 0, %s27
      %s30 = sphi 0, %s28
      %s31 = sphi 0, %s29
      %s32 = sphi 0, %s30
      %s42 = sphi 0, %s44
      %s45 = sphi 0, %s42
      %s46 = sphi 0, %s45
      %s62 = sphi 0, %s46
      %s66 = sphi 0, %s66
      %s68 = sphi 0, %s66
      %s69 = sphi 0, %s68
      %s83 = sphi 0, %s69
      %s91 = sphi 0, %s93
      %s94 = sphi 0, %s91
      %s95 = sphi 0, %s94
      %s111 = sphi 0, %s95
    $region4: #{tpu_custom_call.1} parent=1 // loop_header_branch
      %23 = sbr.rel (%p21) target = $region8
    $region5: #{tpu_custom_call.1} parent=1 // loop_body
      %s25 = ssub.s32 %s20, 1
      %s26 = ssub.s32 %s20, 2
      %s33 = sadd.s32 1, %s28
      %p34 = scmp.ge.s32.totalorder %s33, 1
      %s35 = scalar_select %p34, 0, %s33
      %s36 = sadd.s32 1, %s27
      %s37 = scalar_select %p34, %s36, %s27
      %p38 = scmp.ge.s32.totalorder %s37, 2
      %s39 = scalar_select %p38, 0, %s37
      %s40 = ssub.s32 %s28, %s35
      %p41 = scmp.eq.s32.totalorder %s40, 0
      %s43 = sadd.s32 %s42, 1
      %s44 = scalar_select %p41, %s42, %s43
      %p47 = pneg %p41
      %p48 = scmp.eq.s32.totalorder %s20, 1
      %p49 = por %p47, %p48
      %p50 = scmp.ne.s32.totalorder %s42, %s45
      %p51 = scmp.eq.s32.totalorder %s20, 0
      %p52 = por %p50, %p51
      %p53 = scmp.ne.s32.totalorder %s42, %s45
      %p54 = scmp.eq.s32.totalorder %s25, 1
      %p55 = por %p53, %p54
      %p56 = scmp.ne.s32.totalorder %s45, %s46
      %p57 = scmp.eq.s32.totalorder %s25, 0
      %p58 = por %p56, %p57
      %p59 = scmp.ne.s32.totalorder %s45, %s46
      %p60 = scmp.eq.s32.totalorder %s26, 1
      %p61 = por %p59, %p60
      %p63 = scmp.ne.s32.totalorder %s46, %s62
      %p64 = scmp.eq.s32.totalorder %s26, 0
      %p65 = por %p63, %p64
      %s67 = sadd.s32 %s66, 1
      %p70 = scmp.eq.s32.totalorder %s20, 1
      %p71 = scmp.ne.s32.totalorder %s66, %s68
      %p72 = scmp.eq.s32.totalorder %s20, 0
      %p73 = por %p71, %p72
      %p74 = scmp.ne.s32.totalorder %s66, %s68
      %p75 = scmp.eq.s32.totalorder %s25, 1
      %p76 = por %p74, %p75
      %p77 = scmp.ne.s32.totalorder %s68, %s69
      %p78 = scmp.eq.s32.totalorder %s25, 0
      %p79 = por %p77, %p78
      %p80 = scmp.ne.s32.totalorder %s68, %s69
      %p81 = scmp.eq.s32.totalorder %s26, 1
      %p82 = por %p80, %p81
      %p84 = scmp.ne.s32.totalorder %s69, %s83
      %p85 = scmp.eq.s32.totalorder %s26, 0
      %p86 = por %p84, %p85
      %s87 = ssub.s32 %s27, %s39
      %s88 = ssub.s32 %s28, %s35
      %s89 = sor.u32 %s87, %s88
      %p90 = scmp.eq.s32.totalorder %s89, 0
      %s92 = sadd.s32 %s91, 1
      %s93 = scalar_select %p90, %s91, %s92
      %p96 = pneg %p90
      %p97 = scmp.eq.s32.totalorder %s20, 1
      %p98 = por %p96, %p97
      %p99 = scmp.ne.s32.totalorder %s91, %s94
      %p100 = scmp.eq.s32.totalorder %s20, 0
      %p101 = por %p99, %p100
      %p102 = scmp.ne.s32.totalorder %s91, %s94
      %p103 = scmp.eq.s32.totalorder %s25, 1
      %p104 = por %p102, %p103
      %p105 = scmp.ne.s32.totalorder %s94, %s95
      %p106 = scmp.eq.s32.totalorder %s25, 0
      %p107 = por %p105, %p106
      %p108 = scmp.ne.s32.totalorder %s94, %s95
      %p109 = scmp.eq.s32.totalorder %s26, 1
      %p110 = por %p108, %p109
      %p112 = scmp.ne.s32.totalorder %s95, %s111
      %p113 = scmp.eq.s32.totalorder %s26, 0
      %p114 = por %p112, %p113
      %p115 = scmp.le.s32.totalorder 1, %s20
      %p116 = scmp.lt.s32.totalorder %s20, 3
      %p117 = pnand %p115, %p116
      %p118 = pneg %p117
      // Predicated region
      $region9: #{tpu_custom_call.1} parent=5 // pred_check
        _
      $region10: #{tpu_custom_call.1} parent=5 // pred_check_branch
        %120 = sbr.rel (%p117) target = $region12
      $region11: #{tpu_custom_call.1} parent=5 // pred_region
        %s121 = ssub.s32 %s20, 1
        // Predicated region
        $region13: #{tpu_custom_call.1} parent=11 // pred_check
          %p122 = pneg %p58
        $region14: #{tpu_custom_call.1} parent=11 // pred_check_branch
          %124 = sbr.rel (%p122) target = $region16
        $region15: #{tpu_custom_call.1} parent=11 // pred_region
          %p125 = scmp.lt.s32.totalorder %s30, 0
          %s126 = scalar_select %p125, %s30, 0
          %s127 = smul.addr %s126, 8
          %s128 = scalar_lea.vmem %s1, %s127
        $region16: #{tpu_custom_call.1} parent=11 // pred_fallthru
          _
        // Predicated region
        $region17: #{tpu_custom_call.1} parent=11 // pred_check
          %p129 = pneg %p79
        $region18: #{tpu_custom_call.1} parent=11 // pred_check_branch
          %131 = sbr.rel (%p129) target = $region20
        $region19: #{tpu_custom_call.1} parent=11 // pred_region
          _
        $region20: #{tpu_custom_call.1} parent=11 // pred_fallthru
          _
      $region12: #{tpu_custom_call.1} parent=5 // pred_fallthru
        _
      %p132 = scmp.lt.s32.totalorder %s20, 2
      // Predicated region
      $region21: #{tpu_custom_call.1} parent=5 // pred_check
        %p133 = pneg %p132
      $region22: #{tpu_custom_call.1} parent=5 // pred_check_branch
        %135 = sbr.rel (%p133) target = $region24
      $region23: #{tpu_custom_call.1} parent=5 // pred_region
        _
      $region24: #{tpu_custom_call.1} parent=5 // pred_fallthru
        _
      %p136 = scmp.le.s32.totalorder 1, %s20
      %p137 = scmp.lt.s32.totalorder %s20, 3
      %p138 = pnand %p136, %p137
      %p139 = pneg %p138
      // Predicated region
      $region25: #{tpu_custom_call.1} parent=5 // pred_check
        _
      $region26: #{tpu_custom_call.1} parent=5 // pred_check_branch
        %141 = sbr.rel (%p138) target = $region28
      $region27: #{tpu_custom_call.1} parent=5 // pred_region
        %s142 = ssub.s32 %s20, 1
        %p143 = scmp.lt.s32.totalorder %s30, 0
        %s144 = scalar_select %p143, %s30, 0
        %s145 = smul.addr %s144, 8
        %s146 = scalar_lea.vmem %s1, %s145
        %p147 = pneg %p58
        %p148 = pneg %p55
        %p149 = pneg %p79
        %p150 = pneg %p76
        %p151 = pneg %p107
        %p152 = pneg %p104
        %s153 = sand.u32 %s94, 1
        %s154 = scalar_lea.sflag [#allocation6], %s153
        %s155 = sand.u32 %s94, 1
        %s156 = smul.addr %s155, 8
        %s157 = scalar_lea.vmem [#allocation5], %s156
        %p158 = scmp.lt.s32.totalorder %s30, 0
        %s159 = scalar_select %p158, %s30, 0
        %s160 = smul.addr %s159, 8
        %s161 = scalar_lea.vmem %s1, %s160
        %s162 = smul.u32 %s29, 8
        %s163 = smul.u32 %s30, 8
        %s164 = sadd.s32 %s162, %s163
        %s165 = sld [smem:[#allocation4 + %s164]]
        %s166 = scalar_lea.vmem %s2, %s165
        %v167 = vld [vmem:[%s166] sm:$0x1]
        %vm168 = vcmask 253952
        %169 = vst.msk [vmem:[#allocation2] sm:$0x1] %vm168, %v167
        %s170 = sadd.s32 %s164, 1
        %s171 = sld [smem:[#allocation4 + %s170]]
        %s172 = scalar_lea.vmem %s2, %s171
        %v173 = vld [vmem:[%s172] sm:$0x1]
        %174 = vst.msk [vmem:[#allocation2 + $0x1] sm:$0x1] %vm168, %v173
        %s175 = sadd.s32 %s164, 2
        %s176 = sld [smem:[#allocation4 + %s175]]
        %s177 = scalar_lea.vmem %s2, %s176
        %v178 = vld [vmem:[%s177] sm:$0x1]
        %179 = vst.msk [vmem:[#allocation2 + $0x2] sm:$0x1] %vm168, %v178
        %s180 = sadd.s32 %s164, 3
        %s181 = sld [smem:[#allocation4 + %s180]]
        %s182 = scalar_lea.vmem %s2, %s181
        %v183 = vld [vmem:[%s182] sm:$0x1]
        %184 = vst.msk [vmem:[#allocation2 + $0x3] sm:$0x1] %vm168, %v183
        %s185 = sadd.s32 %s164, 4
        %s186 = sld [smem:[#allocation4 + %s185]]
        %s187 = scalar_lea.vmem %s2, %s186
        %v188 = vld [vmem:[%s187] sm:$0x1]
        %189 = vst.msk [vmem:[#allocation2 + $0x4] sm:$0x1] %vm168, %v188
        %s190 = sadd.s32 %s164, 5
        %s191 = sld [smem:[#allocation4 + %s190]]
        %s192 = scalar_lea.vmem %s2, %s191
        %v193 = vld [vmem:[%s192] sm:$0x1]
        %194 = vst.msk [vmem:[#allocation2 + $0x5] sm:$0x1] %vm168, %v193
        %s195 = sadd.s32 %s164, 6
        %s196 = sld [smem:[#allocation4 + %s195]]
        %s197 = scalar_lea.vmem %s2, %s196
        %v198 = vld [vmem:[%s197] sm:$0x1]
        %199 = vst.msk [vmem:[#allocation2 + $0x6] sm:$0x1] %vm168, %v198
        %s200 = sadd.s32 %s164, 7
        %s201 = sld [smem:[#allocation4 + %s200]]
        %s202 = scalar_lea.vmem %s2, %s201
        %v203 = vld [vmem:[%s202] sm:$0x1]
        %204 = vst.msk [vmem:[#allocation2 + $0x7] sm:$0x1] %vm168, %v203
        %v205 = vld [vmem:[#allocation2] sm:$0xff]
        %v206 = vmul.f32 %v205, 5.656854
        %v207 = vld [vmem:[%s161] sm:$0xff]
        %v208 = vadd.f32 %v206, %v207
        %vm209 = vcmask 261120
        %210 = vst.msk [vmem:[%s157] sm:$0xff] %vm209, %v208
        %s211 = sand.u32 %s94, 1
        %s212 = scalar_lea.sflag [#allocation6], %s211
        %s213 = sand.u32 %s94, 1
        %s214 = smul.addr %s213, 8
        %s215 = scalar_lea.vmem [#allocation5], %s214
        // Predicated region
        $region29: #{tpu_custom_call.1} parent=27 // pred_check
          %p216 = pneg %p104
        $region30: #{tpu_custom_call.1} parent=27 // pred_check_branch
          %218 = sbr.rel (%p216) target = $region32
        $region31: #{tpu_custom_call.1} parent=27 // pred_region
          %220 = vsyncadd %s212, 0
          %s221 = sadd.s32 %s30, %s29
          %s222 = smul.addr %s221, 8
          %s223 = scalar_lea.hbm %s3, %s222
          %s225 = sshll.u32 %s215, 4
          %s226 = int_to_ptr.vmem [resolvable:$true] %s225
          %s227 = sshll.u32 %s223, 4
          %s228 = int_to_ptr.hbm [resolvable:$true] %s227
          %230 = dma.vmem_to_hbm [thread:$0]  %s226, 128, %s228, %s212
        $region32: #{tpu_custom_call.1} parent=27 // pred_fallthru
          _
      $region28: #{tpu_custom_call.1} parent=5 // pred_fallthru
        _
      %p231 = scmp.le.s32.totalorder 2, %s20
      // Predicated region
      $region33: #{tpu_custom_call.1} parent=5 // pred_check
        %p232 = pneg %p231
      $region34: #{tpu_custom_call.1} parent=5 // pred_check_branch
        %234 = sbr.rel (%p232) target = $region36
      $region35: #{tpu_custom_call.1} parent=5 // pred_region
        %s235 = ssub.s32 %s20, 2
        // Predicated region
        $region37: #{tpu_custom_call.1} parent=35 // pred_check
          %p236 = pneg %p110
        $region38: #{tpu_custom_call.1} parent=35 // pred_check_branch
          %238 = sbr.rel (%p236) target = $region40
        $region39: #{tpu_custom_call.1} parent=35 // pred_region
          %s239 = sand.u32 %s95, 1
          %s240 = scalar_lea.sflag [#allocation6], %s239
          %s241 = sand.u32 %s95, 1
          %s242 = smul.addr %s241, 8
          %s243 = scalar_lea.vmem [#allocation5], %s242
          %245 = dma.done %s240, 128
        $region40: #{tpu_custom_call.1} parent=35 // pred_fallthru
          _
      $region36: #{tpu_custom_call.1} parent=5 // pred_fallthru
        _
    $region6: #{tpu_custom_call.1} parent=1 // loop_footer
      %s24 = sadd.s32 1, %s20
    $region7: #{tpu_custom_call.1} parent=1 // loop_footer_branch
      %19 = sbr.rel target = $region3
    $region8: #{tpu_custom_call.1} parent=1 // loop_exit
      _
    %246 = vsyncpa [#allocation6], 1
    %s247 = scalar_lea.sflag [#allocation6], 1
    %248 = vsyncpa %s247, 1

</llo_original>
